<compile_context>
chip_gen: v5e
topology: v5e:2x2
jax: 0.10.0
libtpu: 0.0.40
codegen_flags: <defaults>
</compile_context>

<pallas_src>
import functools

import jax
import jax.numpy as jnp
from jax.experimental import pallas as pl
from jax.experimental.pallas import tpu as pltpu


def mlp_g_kernel(x_ref, w1_ref, b1_ref, w2_ref, b2_ref, wh_ref, bh_ref,
                 y_ref, *, n_outputs):
    """Feature-major fused MLP: all activations are (features, batch_tile).

    Weights are in PyTorch nn.Linear layout (out, in); biases are (out, 1)
    columns that broadcast over the batch lanes.
    """
    x = x_ref[...]                                             # (n_in, Bt)
    # fc1 + relu
    h1 = jnp.dot(w1_ref[...], x, preferred_element_type=jnp.float32) + b1_ref[...]
    h1 = jnp.maximum(h1, 0.0)                                  # (n_h1, Bt)
    # fc2 + relu
    h2 = jnp.dot(w2_ref[...], h1, preferred_element_type=jnp.float32) + b2_ref[...]
    h2 = jnp.maximum(h2, 0.0)                                  # (n_h2, Bt)
    # fused head: rows [0:n_out] = mu, rows [n_out:2*n_out] = sigma
    y = jnp.dot(wh_ref[...], h2, preferred_element_type=jnp.float32) + bh_ref[...]
    # clamp(min=1e-9, max=1e5) only on the sigma rows (sublane/feature axis);
    # lanes (batch) stay fully dense -> one unmasked store.
    row = jax.lax.broadcasted_iota(jnp.int32, y.shape, dimension=0)
    y = jnp.where(row >= n_outputs, jnp.clip(y, 1e-9, 1e5), y)
    y_ref[...] = y.astype(y_ref.dtype)                         # (2*n_out, Bt)


def mlp_g_forward(x, params, *, row_tile=2048, max_single_block=4096,
                  vmem_limit_bytes=32 * 1024 * 1024):
    """x: (B, n_inputs) float32.

    params: 'w1','w2','w_head' in (out, in) layout (w_head = [mu; sigma]
    stacked on the out axis) and 'b1','b2','b_head' as (out, 1) columns.

    Returns (mu, sigma), each (B, n_outputs).
    """
    B, n_in = x.shape
    two_n_out = params["w_head"].shape[0]
    n_out = two_n_out // 2

    kernel = functools.partial(mlp_g_kernel, n_outputs=n_out)
    x_t = x.T  # (n_in, B) — wrapper-side layout plumbing, not compute
    w_args = (params["w1"], params["b1"], params["w2"], params["b2"],
              params["w_head"], params["b_head"])

    if B <= max_single_block:
        # Single full-VMEM block, no grid: grid machinery is pure overhead here
        # (weights ~7 KB, activations a few MB at most).
        vmem = pl.BlockSpec(memory_space=pltpu.MemorySpace.VMEM)
        y_t = pl.pallas_call(
            kernel,
            out_shape=jax.ShapeDtypeStruct((two_n_out, B), jnp.float32),
            in_specs=[vmem] * 7,
            out_specs=vmem,
        )(x_t, *w_args)
    else:
        # Gridded path: tile the batch (lane) axis; weights are full-extent,
        # grid-invariant blocks that stay VMEM-resident for the whole grid.
        # Ragged B is zero-padded (cheap, no fallback to one giant block).
        n_tiles = pl.cdiv(B, row_tile)
        b_pad = n_tiles * row_tile
        if b_pad != B:
            x_t = jnp.pad(x_t, ((0, 0), (0, b_pad - B)))

        def full2d(shape):
            return pl.BlockSpec(shape, lambda i: (0, 0))

        y_t = pl.pallas_call(
            kernel,
            out_shape=jax.ShapeDtypeStruct((two_n_out, b_pad), jnp.float32),
            grid=(n_tiles,),
            in_specs=[
                pl.BlockSpec((n_in, row_tile), lambda i: (0, i)),
                full2d(params["w1"].shape),
                full2d(params["b1"].shape),
                full2d(params["w2"].shape),
                full2d(params["b2"].shape),
                full2d(params["w_head"].shape),
                full2d(params["b_head"].shape),
            ],
            out_specs=pl.BlockSpec((two_n_out, row_tile), lambda i: (0, i)),
            compiler_params=pltpu.CompilerParams(
                # batch axis shards across the two TensorCores on v7x;
                # serial (but still pipelined) on v5e/v6e.
                dimension_semantics=("parallel",),
                vmem_limit_bytes=vmem_limit_bytes),
        )(x_t, *w_args)
        if b_pad != B:
            y_t = y_t[:, :B]

    y = y_t.T  # (B, 2*n_out)
    return y[:, :n_out], y[:, n_out:]


def init_params(key, n_inputs, n_outputs, n_hidden1, n_hidden2):
    """Deterministic init mirroring MLPGNetwork.__init__ (uniform ranges).

    Note: PyTorch code uses f1 = 1/sqrt(fc1.weight.size(0)) = 1/sqrt(n_hidden1)
    and f2 = 1/sqrt(n_hidden2); reproduced faithfully.  Weights are kept in the
    native torch (out, in) layout, biases as (out, 1) columns.
    """
    ks = jax.random.split(key, 8)
    f1 = 1.0 / jnp.sqrt(jnp.float32(n_hidden1))
    f2 = 1.0 / jnp.sqrt(jnp.float32(n_hidden2))
    f3 = 0.003

    def u(k, shape, f):
        return jax.random.uniform(k, shape, jnp.float32, minval=-f, maxval=f)

    wmu = u(ks[4], (n_outputs, n_hidden2), f3)
    bmu = u(ks[5], (n_outputs, 1), f3)
    wsg = u(ks[6], (n_outputs, n_hidden2), f3)
    bsg = u(ks[7], (n_outputs, 1), f3)

    return {
        # torch layout (out, in)
        "w1": u(ks[0], (n_hidden1, n_inputs), f1),
        "b1": u(ks[1], (n_hidden1, 1), f1),
        "w2": u(ks[2], (n_hidden2, n_hidden1), f2),
        "b2": u(ks[3], (n_hidden2, 1), f2),
        # fused head used by the kernel: [mu ; sigma] stacked on the out axis
        "w_head": jnp.concatenate([wmu, wsg], axis=0),
        "b_head": jnp.concatenate([bmu, bsg], axis=0),
        # separate copies kept only for the pure-JAX reference
        "wmu": wmu, "bmu": bmu, "wsg": wsg, "bsg": bsg,
    }


def reference_forward(x, p):
    h1 = jnp.maximum(x @ p["w1"].T + p["b1"].T, 0.0)
    h2 = jnp.maximum(h1 @ p["w2"].T + p["b2"].T, 0.0)
    mu = h2 @ p["wmu"].T + p["bmu"].T
    sigma = jnp.clip(h2 @ p["wsg"].T + p["bsg"].T, 1e-9, 1e5)
    return mu, sigma


if __name__ == "__main__":
    # Shapes consistent with the module: batch=8, n_inputs=16,
    # n_hidden1=32, n_hidden2=32, n_outputs=4
    B, n_inputs, n_hidden1, n_hidden2, n_outputs = 8, 16, 32, 32, 4

    key = jax.random.PRNGKey(0)
    kx, kp, kb = jax.random.split(key, 3)
    x = jax.random.normal(kx, (B, n_inputs), jnp.float32)
    params = init_params(kp, n_inputs, n_outputs, n_hidden1, n_hidden2)

    # 1) tiny batch: single full-block, no-grid call
    mu, sigma = mlp_g_forward(x, params)
    mu, sigma = jax.block_until_ready(mu), jax.block_until_ready(sigma)
    mu_ref, sigma_ref = reference_forward(x, params)
    assert jnp.allclose(mu, mu_ref, atol=1e-5, rtol=1e-5)
    assert jnp.allclose(sigma, sigma_ref, atol=1e-5, rtol=1e-5)
    assert jnp.all(sigma >= 1e-9)

    # 2) batched + ragged: exercises the gridded, lane-dense, padded-tail path
    #    (grid = cdiv(4100, 2048) = 3 tiles, batch axis marked "parallel").
    Bb = 4100
    xb = jax.random.normal(kb, (Bb, n_inputs), jnp.float32)
    mu_b, sigma_b = mlp_g_forward(xb, params, row_tile=2048, max_single_block=2048)
    mu_b, sigma_b = jax.block_until_ready(mu_b), jax.block_until_ready(sigma_b)
    mu_br, sigma_br = reference_forward(xb, params)
    assert mu_b.shape == (Bb, n_outputs) and sigma_b.shape == (Bb, n_outputs)
    assert jnp.allclose(mu_b, mu_br, atol=1e-5, rtol=1e-5)
    assert jnp.allclose(sigma_b, sigma_br, atol=1e-5, rtol=1e-5)
    assert jnp.all(sigma_b >= 1e-9)

    print("KERNEL_OK")
</pallas_src>

<mosaic_0001>
module attributes {stable_mosaic.version = 11 : i64} {
  func.func @mlp_g_kernel(%arg0: memref<16x8xf32, #tpu.memory_space<vmem>>, %arg1: memref<32x16xf32, #tpu.memory_space<vmem>>, %arg2: memref<32x1xf32, #tpu.memory_space<vmem>>, %arg3: memref<32x32xf32, #tpu.memory_space<vmem>>, %arg4: memref<32x1xf32, #tpu.memory_space<vmem>>, %arg5: memref<8x32xf32, #tpu.memory_space<vmem>>, %arg6: memref<8x1xf32, #tpu.memory_space<vmem>>, %arg7: memref<8x8xf32, #tpu.memory_space<vmem>>) attributes {dimension_semantics = [], scalar_prefetch = 0 : i64, scratch_operands = 0 : i64, tpu.core_type = #tpu.core_type<tc>} {
    %c0 = arith.constant 0 : index
    %c0_0 = arith.constant 0 : index
    %0 = vector.load %arg0[%c0, %c0_0] : memref<16x8xf32, #tpu.memory_space<vmem>>, vector<16x8xf32>
    %c0_1 = arith.constant 0 : index
    %c0_2 = arith.constant 0 : index
    %1 = vector.load %arg1[%c0_1, %c0_2] : memref<32x16xf32, #tpu.memory_space<vmem>>, vector<32x16xf32>
    %cst = arith.constant dense<0.000000e+00> : vector<32x8xf32>
    %2 = tpu.matmul %1, %0, %cst {dimension_numbers = #tpu.dot_dimension_numbers<[1], [0], [0], [1], [0, 0, 1, 1], [], []>} : vector<32x16xf32>, vector<16x8xf32>, vector<32x8xf32> -> vector<32x8xf32>
    %c0_3 = arith.constant 0 : index
    %c0_4 = arith.constant 0 : index
    %3 = vector.load %arg2[%c0_3, %c0_4] : memref<32x1xf32, #tpu.memory_space<vmem>>, vector<32x1xf32>
    %4 = vector.broadcast %3 : vector<32x1xf32> to vector<32x8xf32>
    %5 = arith.addf %2, %4 : vector<32x8xf32>
    %cst_5 = arith.constant 0.000000e+00 : f32
    %6 = vector.broadcast %cst_5 : f32 to vector<32x8xf32>
    %7 = arith.maximumf %5, %6 : vector<32x8xf32>
    %c0_6 = arith.constant 0 : index
    %c0_7 = arith.constant 0 : index
    %8 = vector.load %arg3[%c0_6, %c0_7] : memref<32x32xf32, #tpu.memory_space<vmem>>, vector<32x32xf32>
    %cst_8 = arith.constant dense<0.000000e+00> : vector<32x8xf32>
    %9 = tpu.matmul %8, %7, %cst_8 {dimension_numbers = #tpu.dot_dimension_numbers<[1], [0], [0], [1], [0, 0, 1, 1], [], []>} : vector<32x32xf32>, vector<32x8xf32>, vector<32x8xf32> -> vector<32x8xf32>
    %c0_9 = arith.constant 0 : index
    %c0_10 = arith.constant 0 : index
    %10 = vector.load %arg4[%c0_9, %c0_10] : memref<32x1xf32, #tpu.memory_space<vmem>>, vector<32x1xf32>
    %11 = vector.broadcast %10 : vector<32x1xf32> to vector<32x8xf32>
    %12 = arith.addf %9, %11 : vector<32x8xf32>
    %cst_11 = arith.constant 0.000000e+00 : f32
    %13 = vector.broadcast %cst_11 : f32 to vector<32x8xf32>
    %14 = arith.maximumf %12, %13 : vector<32x8xf32>
    %c0_12 = arith.constant 0 : index
    %c0_13 = arith.constant 0 : index
    %15 = vector.load %arg5[%c0_12, %c0_13] : memref<8x32xf32, #tpu.memory_space<vmem>>, vector<8x32xf32>
    %cst_14 = arith.constant dense<0.000000e+00> : vector<8x8xf32>
    %16 = tpu.matmul %15, %14, %cst_14 {dimension_numbers = #tpu.dot_dimension_numbers<[1], [0], [0], [1], [0, 0, 1, 1], [], []>} : vector<8x32xf32>, vector<32x8xf32>, vector<8x8xf32> -> vector<8x8xf32>
    %c0_15 = arith.constant 0 : index
    %c0_16 = arith.constant 0 : index
    %17 = vector.load %arg6[%c0_15, %c0_16] : memref<8x1xf32, #tpu.memory_space<vmem>>, vector<8x1xf32>
    %18 = vector.broadcast %17 : vector<8x1xf32> to vector<8x8xf32>
    %19 = arith.addf %16, %18 : vector<8x8xf32>
    %20 = tpu.iota {dimensions = array<i32: 0>} : vector<8x8xi32>
    %c4_i32 = arith.constant 4 : i32
    %21 = vector.broadcast %c4_i32 : i32 to vector<8x8xi32>
    %22 = arith.cmpi sge, %20, %21 : vector<8x8xi32>
    %cst_17 = arith.constant 9.99999971E-10 : f32
    %cst_18 = arith.constant 1.000000e+05 : f32
    %23 = vector.broadcast %cst_17 : f32 to vector<8x8xf32>
    %24 = arith.maximumf %23, %19 : vector<8x8xf32>
    %25 = vector.broadcast %cst_18 : f32 to vector<8x8xf32>
    %26 = arith.minimumf %25, %24 : vector<8x8xf32>
    %27 = arith.select %22, %26, %19 : vector<8x8xi1>, vector<8x8xf32>
    %c0_19 = arith.constant 0 : index
    %c0_20 = arith.constant 0 : index
    %28 = vector.load %arg7[%c0_19, %c0_20] : memref<8x8xf32, #tpu.memory_space<vmem>>, vector<8x8xf32>
    tpu.vector_store %arg7[%c0_19, %c0_20], %27 {strides = array<i32>} : memref<8x8xf32, #tpu.memory_space<vmem>>, vector<8x8xf32>,
    return
  }
}

</mosaic_0001>

<llo_original>
// kernel: tpu_custom_call.1
$region0: #{tpu_custom_call.1}
  #allocation0 [shape = 'u32[]', space=smem, size = 0x4, offset = 0x4, fixed_abs, tag = 'smem constant byte address 0x4 - core index']
  #allocation1 [shape = 'u32[72,128]{1,0:T(1,128)}', space=vmem, size = 0x9000, scoped, tag = 'internal scratch']
  %s0 = inlined_call_operand.vmem [shape: f32[16,8], index: 0, kind: input, shape index: {}]
  %s1 = inlined_call_operand.vmem [shape: f32[32,16], index: 1, kind: input, shape index: {}]
  %s2 = inlined_call_operand.vmem [shape: f32[32,1], index: 2, kind: input, shape index: {}]
  %s3 = inlined_call_operand.vmem [shape: f32[32,32], index: 3, kind: input, shape index: {}]
  %s4 = inlined_call_operand.vmem [shape: f32[32,1], index: 4, kind: input, shape index: {}]
  %s5 = inlined_call_operand.vmem [shape: f32[8,32], index: 5, kind: input, shape index: {}]
  %s6 = inlined_call_operand.vmem [shape: f32[8,1], index: 6, kind: input, shape index: {}]
  %s7 = inlined_call_operand.hbm [shape: f32[8,8], index: 7, kind: output, shape index: {}]
  %s8 = sld [smem:[#allocation0]]
  $region38: #{tpu_custom_call.1} parent=0
    _
  %s10 = ssub.s32 1, %s8
  %s11 = scalar_select 0, %s10, %s8
  $region1: #{tpu_custom_call.1} parent=0
    #allocation2 [shape = 'u8[4096]{0}', space=vmem, size = 0x1000, scoped, tag = 'output window, operand 0, single buffered']
    #allocation3 [shape = 's32[1]{0}', space=sflag, size = 0x4, scoped, tag = 'scoped memory for tpu_custom_call.1']
    %12 = vsyncpa [#allocation3], 0
    // Predicated region
    $region2: #{tpu_custom_call.1} parent=1 // pred_check
      _
    $region3: #{tpu_custom_call.1} parent=1 // pred_check_branch
      %14 = sbr.rel (0) target = $region5
    $region4: #{tpu_custom_call.1} parent=1 // pred_region
      _
    $region5: #{tpu_custom_call.1} parent=1 // pred_fallthru
      _
    // Predicated region
    $region6: #{tpu_custom_call.1} parent=1 // pred_check
      _
    $region7: #{tpu_custom_call.1} parent=1 // pred_check_branch
      %16 = sbr.rel (0) target = $region9
    $region8: #{tpu_custom_call.1} parent=1 // pred_region
      _
    $region9: #{tpu_custom_call.1} parent=1 // pred_fallthru
      _
    // Predicated region
    $region10: #{tpu_custom_call.1} parent=1 // pred_check
      _
    $region11: #{tpu_custom_call.1} parent=1 // pred_check_branch
      %18 = sbr.rel (0) target = $region13
    $region12: #{tpu_custom_call.1} parent=1 // pred_region
      _
    $region13: #{tpu_custom_call.1} parent=1 // pred_fallthru
      _
    // Predicated region
    $region14: #{tpu_custom_call.1} parent=1 // pred_check
      _
    $region15: #{tpu_custom_call.1} parent=1 // pred_check_branch
      %20 = sbr.rel (0) target = $region17
    $region16: #{tpu_custom_call.1} parent=1 // pred_region
      _
    $region17: #{tpu_custom_call.1} parent=1 // pred_fallthru
      _
    // Predicated region
    $region18: #{tpu_custom_call.1} parent=1 // pred_check
      _
    $region19: #{tpu_custom_call.1} parent=1 // pred_check_branch
      %22 = sbr.rel (0) target = $region21
    $region20: #{tpu_custom_call.1} parent=1 // pred_region
      _
    $region21: #{tpu_custom_call.1} parent=1 // pred_fallthru
      _
    // Predicated region
    $region22: #{tpu_custom_call.1} parent=1 // pred_check
      _
    $region23: #{tpu_custom_call.1} parent=1 // pred_check_branch
      %24 = sbr.rel (0) target = $region25
    $region24: #{tpu_custom_call.1} parent=1 // pred_region
      _
    $region25: #{tpu_custom_call.1} parent=1 // pred_fallthru
      _
    // Predicated region
    $region26: #{tpu_custom_call.1} parent=1 // pred_check
      _
    $region27: #{tpu_custom_call.1} parent=1 // pred_check_branch
      %26 = sbr.rel (0) target = $region29
    $region28: #{tpu_custom_call.1} parent=1 // pred_region
      _
    $region29: #{tpu_custom_call.1} parent=1 // pred_fallthru
      _
    %v27 = vld [vmem:[%s0] sm:$0xff]
    %v28 = vld [vmem:[%s0 + $0x8] sm:$0xff]
    %v29 = vld [vmem:[%s1] sm:$0xff]
    %v30 = vld [vmem:[%s1 + $0x8] sm:$0xff]
    %v31 = vld [vmem:[%s1 + $0x10] sm:$0xff]
    %v32 = vld [vmem:[%s1 + $0x18] sm:$0xff]
    %v33 = vld [vmem:[%s2] sm:$0xff]
    %v34 = vld [vmem:[%s2 + $0x8] sm:$0xff]
    %v35 = vld [vmem:[%s2 + $0x10] sm:$0xff]
    %v36 = vld [vmem:[%s2 + $0x18] sm:$0xff]
    %38 = vset.pattern.permute.xlu0 0
    %39 = vperm.xlu0 %38, %v33
    %v40 = vpop.permute.xlu0 %39
    %43 = vset.pattern.permute.xlu0 0
    %44 = vperm.xlu0 %43, %v34
    %v45 = vpop.permute.xlu0 %44
    %48 = vset.pattern.permute.xlu0 0
    %49 = vperm.xlu0 %48, %v35
    %v50 = vpop.permute.xlu0 %49
    %53 = vset.pattern.permute.xlu0 0
    %54 = vperm.xlu0 %53, %v36
    %v55 = vpop.permute.xlu0 %54
    %vm57 = vcmask 130048
    %v59 = vsel %vm57, %v29, 0
    %v62 = vsel %vm57, %v30, 0
    %v65 = vsel %vm57, %v31, 0
    %v68 = vsel %vm57, %v32, 0
    %70 = vmatpush.msra.mxu0 0.0
    %71 = vmatpush.msra.mxu0 0.0
    %72 = vmatpush.msra.mxu0 0.0
    %73 = vmatpush.msra.mxu0 0.0
    %74 = vmatpush.msra.mxu0 0.0
    %75 = vmatpush.msra.mxu0 0.0
    %76 = vmatpush.msra.mxu0 0.0
    %77 = vmatpush.msra.mxu0 0.0
    %78 = vmatpush.msra.mxu0 0.0
    %79 = vmatpush.msra.mxu0 0.0
    %80 = vmatpush.msra.mxu0 0.0
    %81 = vmatpush.msra.mxu0 0.0
    %82 = vmatpush.msra.mxu0 0.0
    %83 = vmatpush.msra.mxu0 0.0
    %84 = vmatpush.msra.mxu0 %v28
    %85 = vmatpush.msra.mxu0 %v27
    %86 = vmatmul.f32.gmra.mxu0 %v59
    %v87 = vpop.f32.mrf.mxu0
    %v88 = vadd.f32 %v40, %v87
    %89 = vmatmul.f32.gmra.mxu0 %v62
    %v90 = vpop.f32.mrf.mxu0
    %v91 = vadd.f32 %v45, %v90
    %92 = vmatmul.f32.gmra.mxu0 %v65
    %v93 = vpop.f32.mrf.mxu0
    %v94 = vadd.f32 %v50, %v93
    %95 = vmatmul.f32.gmra.mxu0 %v68
    %v96 = vpop.f32.mrf.mxu0
    %v97 = vadd.f32 %v55, %v96
    %98 = vdwg.mxu0
    %v99 = vmax.f32 %v88, 0.0
    %v100 = vmax.f32 %v91, 0.0
    %v101 = vmax.f32 %v94, 0.0
    %v102 = vmax.f32 %v97, 0.0
    %v103 = vld [vmem:[%s3] sm:$0xff]
    %v104 = vld [vmem:[%s3 + $0x8] sm:$0xff]
    %v105 = vld [vmem:[%s3 + $0x10] sm:$0xff]
    %v106 = vld [vmem:[%s3 + $0x18] sm:$0xff]
    %v107 = vld [vmem:[%s4] sm:$0xff]
    %v108 = vld [vmem:[%s4 + $0x8] sm:$0xff]
    %v109 = vld [vmem:[%s4 + $0x10] sm:$0xff]
    %v110 = vld [vmem:[%s4 + $0x18] sm:$0xff]
    %112 = vset.pattern.permute.xlu0 0
    %113 = vperm.xlu0 %112, %v107
    %v114 = vpop.permute.xlu0 %113
    %117 = vset.pattern.permute.xlu0 0
    %118 = vperm.xlu0 %117, %v108
    %v119 = vpop.permute.xlu0 %118
    %122 = vset.pattern.permute.xlu0 0
    %123 = vperm.xlu0 %122, %v109
    %v124 = vpop.permute.xlu0 %123
    %127 = vset.pattern.permute.xlu0 0
    %128 = vperm.xlu0 %127, %v110
    %v129 = vpop.permute.xlu0 %128
    %vm131 = vcmask 261120
    %v133 = vsel %vm131, %v103, 0
    %v136 = vsel %vm131, %v104, 0
    %v139 = vsel %vm131, %v105, 0
    %v142 = vsel %vm131, %v106, 0
    %144 = vmatpush.msra.mxu0 0.0
    %145 = vmatpush.msra.mxu0 0.0
    %146 = vmatpush.msra.mxu0 0.0
    %147 = vmatpush.msra.mxu0 0.0
    %148 = vmatpush.msra.mxu0 0.0
    %149 = vmatpush.msra.mxu0 0.0
    %150 = vmatpush.msra.mxu0 0.0
    %151 = vmatpush.msra.mxu0 0.0
    %152 = vmatpush.msra.mxu0 0.0
    %153 = vmatpush.msra.mxu0 0.0
    %154 = vmatpush.msra.mxu0 0.0
    %155 = vmatpush.msra.mxu0 0.0
    %156 = vmatpush.msra.mxu0 %v102
    %157 = vmatpush.msra.mxu0 %v101
    %158 = vmatpush.msra.mxu0 %v100
    %159 = vmatpush.msra.mxu0 %v99
    %160 = vmatmul.f32.gmra.mxu0 %v133
    %v161 = vpop.f32.mrf.mxu0
    %v162 = vadd.f32 %v114, %v161
    %163 = vmatmul.f32.gmra.mxu0 %v136
    %v164 = vpop.f32.mrf.mxu0
    %v165 = vadd.f32 %v119, %v164
    %166 = vmatmul.f32.gmra.mxu0 %v139
    %v167 = vpop.f32.mrf.mxu0
    %v168 = vadd.f32 %v124, %v167
    %169 = vmatmul.f32.gmra.mxu0 %v142
    %v170 = vpop.f32.mrf.mxu0
    %v171 = vadd.f32 %v129, %v170
    %172 = vdwg.mxu0
    %v173 = vmax.f32 %v162, 0.0
    %v174 = vmax.f32 %v165, 0.0
    %v175 = vmax.f32 %v168, 0.0
    %v176 = vmax.f32 %v171, 0.0
    %v177 = vld [vmem:[%s5] sm:$0xff]
    %v178 = vld [vmem:[%s6] sm:$0xff]
    %180 = vset.pattern.permute.xlu0 0
    %181 = vperm.xlu0 %180, %v178
    %v182 = vpop.permute.xlu0 %181
    %v185 = vsel %vm131, %v177, 0
    %187 = vmatpush.msra.mxu0 0.0
    %188 = vmatpush.msra.mxu0 0.0
    %189 = vmatpush.msra.mxu0 0.0
    %190 = vmatpush.msra.mxu0 0.0
    %191 = vmatpush.msra.mxu0 0.0
    %192 = vmatpush.msra.mxu0 0.0
    %193 = vmatpush.msra.mxu0 0.0
    %194 = vmatpush.msra.mxu0 0.0
    %195 = vmatpush.msra.mxu0 0.0
    %196 = vmatpush.msra.mxu0 0.0
    %197 = vmatpush.msra.mxu0 0.0
    %198 = vmatpush.msra.mxu0 0.0
    %199 = vmatpush.msra.mxu0 %v176
    %200 = vmatpush.msra.mxu0 %v175
    %201 = vmatpush.msra.mxu0 %v174
    %202 = vmatpush.msra.mxu0 %v173
    %203 = vmatmul.f32.gmra.mxu0 %v185
    %v204 = vpop.f32.mrf.mxu0
    %v205 = vadd.f32 %v182, %v204
    %206 = vdwg.mxu0
    %v207 = vlaneseq
    %v208 = vshrl.u32 %v207, 7
    %vm209 = vcmp.ge.s32.totalorder %v208, 4
    %v210 = vmax.f32 %v205, 1e-09
    %v211 = vmin.f32 %v210, 100000.0
    %v212 = vsel %vm209, %v211, %v205
    %vm213 = vcmask 64512
    %214 = vst.msk [vmem:[#allocation2] sm:$0xff] %vm213, %v212
    // Predicated region
    $region30: #{tpu_custom_call.1} parent=1 // pred_check
      _
    $region31: #{tpu_custom_call.1} parent=1 // pred_check_branch
      %216 = sbr.rel (0) target = $region33
    $region32: #{tpu_custom_call.1} parent=1 // pred_region
      %218 = vsyncadd [#allocation3], 0
      %s220 = sshll.u32 [#allocation2], 4
      %s221 = int_to_ptr.vmem [resolvable:$true] %s220
      %s222 = sshll.u32 %s7, 4
      %s223 = int_to_ptr.hbm [resolvable:$true] %s222
      %225 = dma.vmem_to_hbm [thread:$0]  %s221, 128, %s223, [#allocation3]
    $region33: #{tpu_custom_call.1} parent=1 // pred_fallthru
      _
    // Predicated region
    $region34: #{tpu_custom_call.1} parent=1 // pred_check
      _
    $region35: #{tpu_custom_call.1} parent=1 // pred_check_branch
      %227 = sbr.rel (0) target = $region37
    $region36: #{tpu_custom_call.1} parent=1 // pred_region
      %229 = dma.done [#allocation3], 128
    $region37: #{tpu_custom_call.1} parent=1 // pred_fallthru
      _
    %230 = vsyncpa [#allocation3], 1

</llo_original>
